<compile_context>
chip_gen: v7x
topology: tpu7x:2x2x1
jax: 0.10.0
libtpu: 0.0.40
codegen_flags: <defaults>
</compile_context>

<pallas_src>
import functools

import jax
import jax.numpy as jnp
from jax.experimental import pallas as pl
from jax.experimental.pallas import tpu as pltpu

_LANES = 1024            # lane-dense last dim (8 * 128)
_MAX_BLOCK_ROWS = 512    # 512 x 1024 f32 = 2 MiB / block; <=3 operands double-buffered < 16 MiB VMEM


def _binary_sigmoid_det_kernel(x_ref, o_ref):
    # sigmoid(x) >= 0.5  <=>  x >= 0  (no transcendental, no f32 upcast needed)
    o_ref[...] = (x_ref[...] >= 0).astype(o_ref.dtype)


def _binary_sigmoid_stoch_kernel(x_ref, u_ref, o_ref):
    # out ~ Bernoulli(sigmoid(x)); u is uniform[0,1) streamed from HBM.
    # (The original torch code samples bernoulli over an *uninitialized* tensor; we implement
    #  the intended semantics: sample with probability sigmoid(x).)
    p = jax.nn.sigmoid(x_ref[...].astype(jnp.float32))
    o_ref[...] = (u_ref[...] < p).astype(o_ref.dtype)


def _slab_dims(n):
    """Return (padded_rows, block_rows) for a lane-dense (rows, _LANES) slab covering n elems."""
    rows = max(1, -(-n // _LANES))
    block_rows = min(_MAX_BLOCK_ROWS, -(-rows // 8) * 8)   # multiple of 8 sublanes
    padded_rows = -(-rows // block_rows) * block_rows       # whole number of blocks
    return padded_rows, block_rows


@functools.partial(jax.jit, static_argnames=("stochastic",))
def binary_sigmoid(x, key=None, stochastic=False):
    """Forward pass of BinarySigmoid. x: any-shaped float array (e.g. NCHW).

    Returns same shape/dtype with values in {0, 1}.
    """
    orig_shape = x.shape
    orig_dtype = x.dtype
    n = x.size

    padded_rows, block_rows = _slab_dims(n)
    padded_n = padded_rows * _LANES

    flat = x.reshape((-1,))
    if padded_n != n:
        flat = jnp.pad(flat, (0, padded_n - n))             # padding is elementwise-harmless
    x2d = flat.reshape((padded_rows, _LANES))

    grid = (padded_rows // block_rows,)
    bspec = pl.BlockSpec((block_rows, _LANES), lambda i: (i, 0))
    cparams = pltpu.CompilerParams(dimension_semantics=("parallel",))

    if not stochastic:
        out2d = pl.pallas_call(
            _binary_sigmoid_det_kernel,
            out_shape=jax.ShapeDtypeStruct((padded_rows, _LANES), orig_dtype),
            grid=grid,
            in_specs=[bspec],
            out_specs=bspec,
            compiler_params=cparams,
        )(x2d)
    else:
        if key is None:
            key = jax.random.PRNGKey(0)
        # TODO(synk): in-kernel pltpu.prng_* would avoid streaming the uniforms from HBM, but it
        # has no CPU/interpret lowering; generate uniforms with jax.random in the wrapper instead.
        u2d = jax.random.uniform(key, (padded_rows, _LANES), dtype=jnp.float32)
        out2d = pl.pallas_call(
            _binary_sigmoid_stoch_kernel,
            out_shape=jax.ShapeDtypeStruct((padded_rows, _LANES), orig_dtype),
            grid=grid,
            in_specs=[bspec, bspec],
            out_specs=bspec,
            compiler_params=cparams,
        )(x2d, u2d)

    return out2d.reshape((-1,))[:n].reshape(orig_shape)


if __name__ == "__main__":
    key = jax.random.PRNGKey(0)
    # NCHW input, same convention as the PyTorch module
    x = jax.random.normal(key, (2, 4, 16, 16), dtype=jnp.float32)

    # deterministic path (stochastic=False, the module default)
    out_det = jax.block_until_ready(binary_sigmoid(x, stochastic=False))
    assert out_det.shape == x.shape and out_det.dtype == x.dtype
    ref = (jax.nn.sigmoid(x) >= 0.5).astype(x.dtype)
    # exact everywhere except the (measure-zero) sigmoid(x)==0.5 rounding tie near x==0
    mismatch = out_det != ref
    assert bool(jnp.all(~mismatch | (jnp.abs(x) < 1e-6)))
    assert bool(jnp.all((out_det == 0.0) | (out_det == 1.0)))

    # stochastic path: Bernoulli(sigmoid(x)) -- check it runs and is binary
    out_sto = jax.block_until_ready(
        binary_sigmoid(x, key=jax.random.PRNGKey(123), stochastic=True)
    )
    assert out_sto.shape == x.shape and out_sto.dtype == x.dtype
    assert bool(jnp.all((out_sto == 0.0) | (out_sto == 1.0)))

    print("KERNEL_OK")
</pallas_src>

<mosaic_0001>
module attributes {stable_mosaic.version = 11 : i64} {
  func.func @_binary_sigmoid_det_kernel(%arg0: i32, %arg1: memref<8x1024xf32, #tpu.memory_space<vmem>>, %arg2: memref<8x1024xf32, #tpu.memory_space<vmem>>) attributes {dimension_semantics = [#tpu.dimension_semantics<parallel>], iteration_bounds = array<i64: 1>, scalar_prefetch = 0 : i64, scratch_operands = 0 : i64, tpu.core_type = #tpu.core_type<tc>, window_params = [{transform_indices = @transform_0, window_bounds = array<i64: 8, 1024>}, {transform_indices = @transform_1, window_bounds = array<i64: 8, 1024>}]} {
    %c0 = arith.constant 0 : index
    %c0_0 = arith.constant 0 : index
    %0 = vector.load %arg1[%c0, %c0_0] : memref<8x1024xf32, #tpu.memory_space<vmem>>, vector<8x1024xf32>
    %cst = arith.constant 0.000000e+00 : f32
    %1 = vector.broadcast %cst : f32 to vector<8x1024xf32>
    %2 = arith.cmpf oge, %0, %1 : vector<8x1024xf32>
    %3 = arith.extui %2 : vector<8x1024xi1> to vector<8x1024xi32>
    %4 = arith.sitofp %3 : vector<8x1024xi32> to vector<8x1024xf32>
    %c0_1 = arith.constant 0 : index
    %c0_2 = arith.constant 0 : index
    %5 = vector.load %arg2[%c0_1, %c0_2] : memref<8x1024xf32, #tpu.memory_space<vmem>>, vector<8x1024xf32>
    tpu.vector_store %arg2[%c0_1, %c0_2], %4 {strides = array<i32>} : memref<8x1024xf32, #tpu.memory_space<vmem>>, vector<8x1024xf32>,
    return
  }
  func.func @transform_0(%arg0: i32) -> (i32, i32) {
    %c0_i32 = arith.constant 0 : i32
    %c0_i32_0 = arith.constant 0 : i32
    return %arg0, %c0_i32 : i32, i32
  }
  func.func @transform_1(%arg0: i32) -> (i32, i32) {
    %c0_i32 = arith.constant 0 : i32
    %c0_i32_0 = arith.constant 0 : i32
    return %arg0, %c0_i32 : i32, i32
  }
}

</mosaic_0001>

<llo_original>
// kernel: binary_sigmoid.1
$region0: #{binary_sigmoid.1}
  #allocation0 [shape = 'u32[]', space=smem, size = 0x4, offset = 0x4, fixed_abs, tag = 'smem constant byte address 0x4 - core index']
  #allocation1 [shape = 'u32[144,128]{1,0:T(1,128)}', space=vmem, size = 0x12000, scoped, tag = 'internal scratch']
  %s0 = inlined_call_operand.vmem [shape: f32[8,1024], index: 0, kind: input, shape index: {}]
  %s1 = inlined_call_operand.vmem [shape: f32[8,1024], index: 1, kind: output, shape index: {}]
  %s2 = sld [smem:[#allocation0]]
  $region14: #{binary_sigmoid.1} parent=0
    _
  %s4 = ssub.s32 1, %s2
  %s5 = scalar_select 0, %s4, %s2
  // Predicated region
  $region2: #{binary_sigmoid.1} parent=0 // pred_check
    _
  $region3: #{binary_sigmoid.1} parent=0 // pred_check_branch
    %7 = sbr.rel (0) target = $region5
  $region4: #{binary_sigmoid.1} parent=0 // pred_region
    _
  $region5: #{binary_sigmoid.1} parent=0 // pred_fallthru
    _
  %v8 = vld [vmem:[%s0] sm:$0xff]
  %v9 = vld [vmem:[%s0 + $0x8] sm:$0xff]
  %v10 = vld [vmem:[%s0 + $0x10] sm:$0xff]
  %v11 = vld [vmem:[%s0 + $0x18] sm:$0xff]
  %v12 = vld [vmem:[%s0 + $0x20] sm:$0xff]
  %v13 = vld [vmem:[%s0 + $0x28] sm:$0xff]
  %v14 = vld [vmem:[%s0 + $0x30] sm:$0xff]
  %v15 = vld [vmem:[%s0 + $0x38] sm:$0xff]
  %vm16 = vcmp.ge.f32.partialorder %v8, 0.0
  %vm17 = vcmp.ge.f32.partialorder %v9, 0.0
  %vm18 = vcmp.ge.f32.partialorder %v10, 0.0
  %vm19 = vcmp.ge.f32.partialorder %v11, 0.0
  %vm20 = vcmp.ge.f32.partialorder %v12, 0.0
  %vm21 = vcmp.ge.f32.partialorder %v13, 0.0
  %vm22 = vcmp.ge.f32.partialorder %v14, 0.0
  %vm23 = vcmp.ge.f32.partialorder %v15, 0.0
  %v24 = vsel %vm16, 1, 0
  %v25 = vsel %vm17, 1, 0
  %v26 = vsel %vm18, 1, 0
  %v27 = vsel %vm19, 1, 0
  %v28 = vsel %vm20, 1, 0
  %v29 = vsel %vm21, 1, 0
  %v30 = vsel %vm22, 1, 0
  %v31 = vsel %vm23, 1, 0
  %v32 = vcvt.s32.f32 %v24
  %v33 = vcvt.s32.f32 %v25
  %v34 = vcvt.s32.f32 %v26
  %v35 = vcvt.s32.f32 %v27
  %v36 = vcvt.s32.f32 %v28
  %v37 = vcvt.s32.f32 %v29
  %v38 = vcvt.s32.f32 %v30
  %v39 = vcvt.s32.f32 %v31
  %40 = vst [vmem:[%s1] sm:$0xff] %v32
  %41 = vst [vmem:[%s1 + $0x8] sm:$0xff] %v33
  %42 = vst [vmem:[%s1 + $0x10] sm:$0xff] %v34
  %43 = vst [vmem:[%s1 + $0x18] sm:$0xff] %v35
  %44 = vst [vmem:[%s1 + $0x20] sm:$0xff] %v36
  %45 = vst [vmem:[%s1 + $0x28] sm:$0xff] %v37
  %46 = vst [vmem:[%s1 + $0x30] sm:$0xff] %v38
  %47 = vst [vmem:[%s1 + $0x38] sm:$0xff] %v39
  // Predicated region
  $region6: #{binary_sigmoid.1} parent=0 // pred_check
    _
  $region7: #{binary_sigmoid.1} parent=0 // pred_check_branch
    %49 = sbr.rel (0) target = $region9
  $region8: #{binary_sigmoid.1} parent=0 // pred_region
    _
  $region9: #{binary_sigmoid.1} parent=0 // pred_fallthru
    _
  // Predicated region
  $region10: #{binary_sigmoid.1} parent=0 // pred_check
    _
  $region11: #{binary_sigmoid.1} parent=0 // pred_check_branch
    %51 = sbr.rel (0) target = $region13
  $region12: #{binary_sigmoid.1} parent=0 // pred_region
    _
  $region13: #{binary_sigmoid.1} parent=0 // pred_fallthru
    _

</llo_original>
